<compile_context>
chip_gen: v7x
topology: tpu7x:2x2x1
jax: 0.10.0
libtpu: 0.0.40
codegen_flags: <defaults>
</compile_context>

<pallas_src>
import math
from functools import partial

import jax
import jax.numpy as jnp
import numpy as np
from jax.experimental import pallas as pl
from jax.experimental.pallas import tpu as pltpu


# ---------------------------------------------------------------------------
# In-kernel math helpers (exp / mul / add / where only -> safe Mosaic lowering)
# ---------------------------------------------------------------------------
def _erf(x):
    # Abramowitz & Stegun 7.1.26 (max abs err ~1.5e-7); only applied to the
    # tiny (NB, 1, C//4) tensor, so the polynomial cost is negligible.
    a1, a2, a3, a4, a5 = (0.254829592, -0.284496736, 1.421413741,
                          -1.453152027, 1.061405429)
    p = 0.3275911
    ax = jnp.abs(x)
    t = 1.0 / (1.0 + p * ax)
    poly = ((((a5 * t + a4) * t + a3) * t + a2) * t + a1) * t
    y = 1.0 - poly * jnp.exp(-(ax * ax))
    return jnp.where(x >= 0, y, -y)


def _gelu(x):
    return 0.5 * x * (1.0 + _erf(x * 0.7071067811865476))


def _sigmoid_exact(x):
    # Exact sigmoid for the (tiny) channel-scale vector.
    return 1.0 / (1.0 + jnp.exp(-x))


# ---------------------------------------------------------------------------
# Fused Atten kernel: one program per batch block of NB images
# ---------------------------------------------------------------------------
def _atten_kernel(x_ref, w1_ref, b1_ref, w2_ref, b2_ref, o_ref, *, inv_hw):
    # x_ref / o_ref : (NB, C, HWp)   (spatial on lanes, C on sublanes)
    # w1_ref, w2_ref: (C, C4)   b1_ref: (1, C4)   b2_ref: (C, 1)
    x = x_ref[...].astype(jnp.float32)                          # (NB, C, HWp)

    # AdaptiveAvgPool2d(1): mean over the (lane) spatial axis.  Zero-padded
    # lanes add nothing; divide by the TRUE H*W.
    pooled = jnp.sum(x, axis=-1, keepdims=True) * inv_hw        # (NB, C, 1)

    # Conv1x1 (C -> C/4) + GELU: sublane reduction (no relayout needed).
    h = jnp.sum(pooled * w1_ref[...], axis=1, keepdims=True) + b1_ref[...]   # (NB, 1, C4)
    h = _gelu(h)

    # Conv1x1 (C/4 -> C) + Sigmoid: lane reduction (w2 stored (C, C4)).
    z = jnp.sum(w2_ref[...] * h, axis=-1, keepdims=True) + b2_ref[...]       # (NB, C, 1)
    s = _sigmoid_exact(z)                                                    # (NB, C, 1)

    xs = x * s                                                  # channel scale (NB, C, HWp)
    max_out = jnp.max(xs, axis=1, keepdims=True)                # channel max  (NB, 1, HWp)
    # Spatial gate sigmoid: exp on EUP + approx reciprocal (keeps VPU free).
    gate = pl.reciprocal(1.0 + jnp.exp(-max_out), approx=True)
    o_ref[...] = (x + xs * gate).astype(o_ref.dtype)


def atten_forward(params, x_nchw, *, target_block_bytes=1 << 20):
    """Atten forward pass.  x_nchw: (N, C, H, W) f32 or bf16 -> same shape/dtype."""
    N, C, H, W = x_nchw.shape
    C4 = params["w1"].shape[1]
    HW = H * W
    HWp = ((HW + 127) // 128) * 128            # lane-dense last dim
    itemsize = jnp.dtype(x_nchw.dtype).itemsize

    x = x_nchw.reshape(N, C, HW)               # free reshape (spatial already last)
    if HWp != HW:
        x = jnp.pad(x, ((0, 0), (0, 0), (0, HWp - HW)))

    # ---- batch blocking: ~1 MiB x-block per grid step, >=2 steps if N >= 2 ----
    nb = max(1, target_block_bytes // (C * HWp * itemsize))
    nb = min(nb, N)
    if N >= 2:
        nb = min(nb, (N + 1) // 2)             # keep both v7x TCs busy
    Np = ((N + nb - 1) // nb) * nb
    if Np != N:
        x = jnp.pad(x, ((0, Np - N), (0, 0), (0, 0)))
    grid = (Np // nb,)

    cost = pl.CostEstimate(
        flops=int(6 * Np * C * HWp + 4 * Np * C * C4),
        transcendentals=int(Np * (C4 + C + HWp)),
        bytes_accessed=int(2 * Np * C * HWp * itemsize + (2 * C * C4 + C + C4) * 4),
    )

    out = pl.pallas_call(
        partial(_atten_kernel, inv_hw=1.0 / float(HW)),
        out_shape=jax.ShapeDtypeStruct((Np, C, HWp), x.dtype),
        grid=grid,
        in_specs=[
            pl.BlockSpec((nb, C, HWp), lambda n: (n, 0, 0)),
            pl.BlockSpec((C, C4), lambda n: (0, 0)),     # weights resident across grid
            pl.BlockSpec((1, C4), lambda n: (0, 0)),
            pl.BlockSpec((C, C4), lambda n: (0, 0)),
            pl.BlockSpec((C, 1), lambda n: (0, 0)),
        ],
        out_specs=pl.BlockSpec((nb, C, HWp), lambda n: (n, 0, 0)),
        compiler_params=pltpu.CompilerParams(
            dimension_semantics=("parallel",),           # batch blocks -> megacore
        ),
        cost_estimate=cost,
    )(x, params["w1"], params["b1"], params["w2"], params["b2"])

    if Np != N or HWp != HW:
        out = out[:N, :, :HW]
    return out.reshape(N, C, H, W)


# ---------------------------------------------------------------------------
# Parameters (same shapes as the PyTorch module, stored reduce-friendly)
#   w1[c, k] == conv1.weight[k, c, 0, 0]      b1[0, k] == conv1.bias[k]
#   w2[c, k] == conv2.weight[c, k, 0, 0]      b2[c, 0] == conv2.bias[c]
# ---------------------------------------------------------------------------
def init_atten_params(key, dim):
    c4 = dim // 4
    k1, k2, k3, k4 = jax.random.split(key, 4)
    return {
        "w1": jax.random.normal(k1, (dim, c4), jnp.float32) / math.sqrt(dim),
        "b1": 0.01 * jax.random.normal(k2, (1, c4), jnp.float32),
        "w2": jax.random.normal(k3, (dim, c4), jnp.float32) / math.sqrt(c4),
        "b2": 0.01 * jax.random.normal(k4, (dim, 1), jnp.float32),
    }


# Pure-JAX reference (mirrors the PyTorch forward) for a correctness check.
def atten_reference(params, x):
    pooled = jnp.mean(x, axis=(2, 3))                                   # (N, C)
    h = pooled @ params["w1"] + params["b1"]                            # (N, C4)
    h = jax.nn.gelu(h, approximate=False)
    z = h @ params["w2"].T + params["b2"][:, 0]                         # (N, C)
    s = jax.nn.sigmoid(z)[:, :, None, None]                             # (N, C, 1, 1)
    xs = x * s
    max_out = jnp.max(xs, axis=1, keepdims=True)                        # (N, 1, H, W)
    return x + xs * jax.nn.sigmoid(max_out)


# ---------------------------------------------------------------------------
if __name__ == "__main__":
    B, dim, H, W = 2, 32, 16, 16                    # dim must be divisible by 4

    key = jax.random.PRNGKey(0)
    kp, kx = jax.random.split(key)
    params = init_atten_params(kp, dim)
    x = jax.random.normal(kx, (B, dim, H, W), jnp.float32)

    fwd = jax.jit(atten_forward)
    out = fwd(params, x)
    jax.block_until_ready(out)
    assert out.shape == (B, dim, H, W)

    ref = atten_reference(params, x)
    # Tolerance covers the approx-reciprocal (~2^-12 rel) in the spatial gate.
    np.testing.assert_allclose(np.asarray(out), np.asarray(ref),
                               rtol=3e-3, atol=3e-3)

    # bf16 I/O path (HBM-bandwidth-bound kernel -> ~2x fewer bytes); compute
    # inside the kernel stays f32, so this is v5e-safe too.
    xb = x.astype(jnp.bfloat16)
    outb = jax.jit(atten_forward)(params, xb)
    jax.block_until_ready(outb)
    assert outb.dtype == jnp.bfloat16 and outb.shape == (B, dim, H, W)
    refb = atten_reference(params, xb.astype(jnp.float32))
    np.testing.assert_allclose(np.asarray(outb, dtype=np.float32),
                               np.asarray(refb), rtol=4e-2, atol=4e-2)

    print("KERNEL_OK")
</pallas_src>

<mosaic_0001>
module attributes {stable_mosaic.version = 11 : i64} {
  func.func @_atten_kernel(%arg0: i32, %arg1: memref<1x32x256xf32, #tpu.memory_space<vmem>>, %arg2: memref<32x8xf32, #tpu.memory_space<vmem>>, %arg3: memref<1x8xf32, #tpu.memory_space<vmem>>, %arg4: memref<32x8xf32, #tpu.memory_space<vmem>>, %arg5: memref<32x1xf32, #tpu.memory_space<vmem>>, %arg6: memref<1x32x256xf32, #tpu.memory_space<vmem>>) attributes {dimension_semantics = [#tpu.dimension_semantics<parallel>], iteration_bounds = array<i64: 2>, scalar_prefetch = 0 : i64, scratch_operands = 0 : i64, tpu.core_type = #tpu.core_type<tc>, window_params = [{transform_indices = @transform_0, window_bounds = array<i64: 1, 32, 256>}, {pipeline_mode = #tpu.pipeline_mode<synchronous>, transform_indices = @transform_1, window_bounds = array<i64: 32, 8>}, {pipeline_mode = #tpu.pipeline_mode<synchronous>, transform_indices = @transform_2, window_bounds = array<i64: 1, 8>}, {pipeline_mode = #tpu.pipeline_mode<synchronous>, transform_indices = @transform_3, window_bounds = array<i64: 32, 8>}, {pipeline_mode = #tpu.pipeline_mode<synchronous>, transform_indices = @transform_4, window_bounds = array<i64: 32, 1>}, {transform_indices = @transform_5, window_bounds = array<i64: 1, 32, 256>}]} {
    %c0 = arith.constant 0 : index
    %c0_0 = arith.constant 0 : index
    %c0_1 = arith.constant 0 : index
    %0 = vector.load %arg1[%c0, %c0_0, %c0_1] : memref<1x32x256xf32, #tpu.memory_space<vmem>>, vector<1x32x256xf32>
    %cst = arith.constant dense<0.000000e+00> : vector<1x32xf32>
    %1 = vector.multi_reduction <add>, %0, %cst [2] : vector<1x32x256xf32> to vector<1x32xf32>
    %2 = vector.shape_cast %1 : vector<1x32xf32> to vector<1x32x1xf32>
    %cst_2 = arith.constant 3.906250e-03 : f32
    %3 = vector.broadcast %cst_2 : f32 to vector<1x32x1xf32>
    %4 = arith.mulf %2, %3 : vector<1x32x1xf32>
    %c0_3 = arith.constant 0 : index
    %c0_4 = arith.constant 0 : index
    %5 = vector.load %arg2[%c0_3, %c0_4] : memref<32x8xf32, #tpu.memory_space<vmem>>, vector<32x8xf32>
    %6 = vector.shape_cast %5 : vector<32x8xf32> to vector<1x32x8xf32>
    %7 = vector.broadcast %4 : vector<1x32x1xf32> to vector<1x32x8xf32>
    %8 = arith.mulf %7, %6 : vector<1x32x8xf32>
    %cst_5 = arith.constant dense<0.000000e+00> : vector<1x8xf32>
    %9 = vector.multi_reduction <add>, %8, %cst_5 [1] : vector<1x32x8xf32> to vector<1x8xf32>
    %10 = vector.shape_cast %9 : vector<1x8xf32> to vector<1x1x8xf32>
    %c0_6 = arith.constant 0 : index
    %c0_7 = arith.constant 0 : index
    %11 = vector.load %arg3[%c0_6, %c0_7] : memref<1x8xf32, #tpu.memory_space<vmem>>, vector<1x8xf32>
    %12 = vector.shape_cast %11 : vector<1x8xf32> to vector<1x1x8xf32>
    %13 = arith.addf %10, %12 : vector<1x1x8xf32>
    %cst_8 = arith.constant 5.000000e-01 : f32
    %14 = vector.broadcast %cst_8 : f32 to vector<1x1x8xf32>
    %15 = arith.mulf %14, %13 : vector<1x1x8xf32>
    %cst_9 = arith.constant 0.707106769 : f32
    %16 = vector.broadcast %cst_9 : f32 to vector<1x1x8xf32>
    %17 = arith.mulf %13, %16 : vector<1x1x8xf32>
    %18 = math.absf %17 : vector<1x1x8xf32>
    %cst_10 = arith.constant 0.327591091 : f32
    %19 = vector.broadcast %cst_10 : f32 to vector<1x1x8xf32>
    %20 = arith.mulf %19, %18 : vector<1x1x8xf32>
    %cst_11 = arith.constant 1.000000e+00 : f32
    %21 = vector.broadcast %cst_11 : f32 to vector<1x1x8xf32>
    %22 = arith.addf %21, %20 : vector<1x1x8xf32>
    %cst_12 = arith.constant 1.000000e+00 : f32
    %23 = vector.broadcast %cst_12 : f32 to vector<1x1x8xf32>
    %24 = arith.divf %23, %22 : vector<1x1x8xf32>
    %cst_13 = arith.constant 1.06140542 : f32
    %25 = vector.broadcast %cst_13 : f32 to vector<1x1x8xf32>
    %26 = arith.mulf %25, %24 : vector<1x1x8xf32>
    %cst_14 = arith.constant -1.45315206 : f32
    %27 = vector.broadcast %cst_14 : f32 to vector<1x1x8xf32>
    %28 = arith.addf %26, %27 : vector<1x1x8xf32>
    %29 = arith.mulf %28, %24 : vector<1x1x8xf32>
    %cst_15 = arith.constant 1.42141378 : f32
    %30 = vector.broadcast %cst_15 : f32 to vector<1x1x8xf32>
    %31 = arith.addf %29, %30 : vector<1x1x8xf32>
    %32 = arith.mulf %31, %24 : vector<1x1x8xf32>
    %cst_16 = arith.constant -0.284496725 : f32
    %33 = vector.broadcast %cst_16 : f32 to vector<1x1x8xf32>
    %34 = arith.addf %32, %33 : vector<1x1x8xf32>
    %35 = arith.mulf %34, %24 : vector<1x1x8xf32>
    %cst_17 = arith.constant 0.254829586 : f32
    %36 = vector.broadcast %cst_17 : f32 to vector<1x1x8xf32>
    %37 = arith.addf %35, %36 : vector<1x1x8xf32>
    %38 = arith.mulf %37, %24 : vector<1x1x8xf32>
    %39 = arith.mulf %18, %18 : vector<1x1x8xf32>
    %cst_18 = arith.constant 0.000000e+00 : f32
    %40 = vector.broadcast %cst_18 : f32 to vector<1x1x8xf32>
    %41 = arith.subf %40, %39 : vector<1x1x8xf32>
    %42 = math.exp %41 : vector<1x1x8xf32>
    %43 = arith.mulf %38, %42 : vector<1x1x8xf32>
    %cst_19 = arith.constant 1.000000e+00 : f32
    %44 = vector.broadcast %cst_19 : f32 to vector<1x1x8xf32>
    %45 = arith.subf %44, %43 : vector<1x1x8xf32>
    %cst_20 = arith.constant 0.000000e+00 : f32
    %46 = vector.broadcast %cst_20 : f32 to vector<1x1x8xf32>
    %47 = arith.cmpf oge, %17, %46 : vector<1x1x8xf32>
    %cst_21 = arith.constant 0.000000e+00 : f32
    %48 = vector.broadcast %cst_21 : f32 to vector<1x1x8xf32>
    %49 = arith.subf %48, %45 : vector<1x1x8xf32>
    %50 = arith.select %47, %45, %49 : vector<1x1x8xi1>, vector<1x1x8xf32>
    %cst_22 = arith.constant 1.000000e+00 : f32
    %51 = vector.broadcast %cst_22 : f32 to vector<1x1x8xf32>
    %52 = arith.addf %51, %50 : vector<1x1x8xf32>
    %53 = arith.mulf %15, %52 : vector<1x1x8xf32>
    %c0_23 = arith.constant 0 : index
    %c0_24 = arith.constant 0 : index
    %54 = vector.load %arg4[%c0_23, %c0_24] : memref<32x8xf32, #tpu.memory_space<vmem>>, vector<32x8xf32>
    %55 = vector.shape_cast %54 : vector<32x8xf32> to vector<1x32x8xf32>
    %56 = vector.broadcast %53 : vector<1x1x8xf32> to vector<1x32x8xf32>
    %57 = arith.mulf %55, %56 : vector<1x32x8xf32>
    %cst_25 = arith.constant dense<0.000000e+00> : vector<1x32xf32>
    %58 = vector.multi_reduction <add>, %57, %cst_25 [2] : vector<1x32x8xf32> to vector<1x32xf32>
    %59 = vector.shape_cast %58 : vector<1x32xf32> to vector<1x32x1xf32>
    %c0_26 = arith.constant 0 : index
    %c0_27 = arith.constant 0 : index
    %60 = vector.load %arg5[%c0_26, %c0_27] : memref<32x1xf32, #tpu.memory_space<vmem>>, vector<32x1xf32>
    %61 = vector.shape_cast %60 : vector<32x1xf32> to vector<1x32x1xf32>
    %62 = arith.addf %59, %61 : vector<1x32x1xf32>
    %cst_28 = arith.constant 0.000000e+00 : f32
    %63 = vector.broadcast %cst_28 : f32 to vector<1x32x1xf32>
    %64 = arith.subf %63, %62 : vector<1x32x1xf32>
    %65 = math.exp %64 : vector<1x32x1xf32>
    %cst_29 = arith.constant 1.000000e+00 : f32
    %66 = vector.broadcast %cst_29 : f32 to vector<1x32x1xf32>
    %67 = arith.addf %66, %65 : vector<1x32x1xf32>
    %cst_30 = arith.constant 1.000000e+00 : f32
    %68 = vector.broadcast %cst_30 : f32 to vector<1x32x1xf32>
    %69 = arith.divf %68, %67 : vector<1x32x1xf32>
    %70 = vector.broadcast %69 : vector<1x32x1xf32> to vector<1x32x256xf32>
    %71 = arith.mulf %0, %70 : vector<1x32x256xf32>
    %cst_31 = arith.constant dense<0xFF800000> : vector<1x256xf32>
    %72 = vector.multi_reduction <maximumf>, %71, %cst_31 [1] : vector<1x32x256xf32> to vector<1x256xf32>
    %73 = vector.shape_cast %72 : vector<1x256xf32> to vector<1x1x256xf32>
    %cst_32 = arith.constant 0.000000e+00 : f32
    %74 = vector.broadcast %cst_32 : f32 to vector<1x1x256xf32>
    %75 = arith.subf %74, %73 : vector<1x1x256xf32>
    %76 = math.exp %75 : vector<1x1x256xf32>
    %cst_33 = arith.constant 1.000000e+00 : f32
    %77 = vector.broadcast %cst_33 : f32 to vector<1x1x256xf32>
    %78 = arith.addf %77, %76 : vector<1x1x256xf32>
    %79 = tpu.reciprocal %78 {approx = true} : vector<1x1x256xf32> -> vector<1x1x256xf32>
    %80 = vector.broadcast %79 : vector<1x1x256xf32> to vector<1x32x256xf32>
    %81 = arith.mulf %71, %80 : vector<1x32x256xf32>
    %82 = arith.addf %0, %81 : vector<1x32x256xf32>
    %c0_34 = arith.constant 0 : index
    %c0_35 = arith.constant 0 : index
    %c0_36 = arith.constant 0 : index
    %83 = vector.load %arg6[%c0_34, %c0_35, %c0_36] : memref<1x32x256xf32, #tpu.memory_space<vmem>>, vector<1x32x256xf32>
    tpu.vector_store %arg6[%c0_34, %c0_35, %c0_36], %82 {strides = array<i32>} : memref<1x32x256xf32, #tpu.memory_space<vmem>>, vector<1x32x256xf32>,
    return
  }
  func.func @transform_0(%arg0: i32) -> (i32, i32, i32) {
    %c0_i32 = arith.constant 0 : i32
    %c0_i32_0 = arith.constant 0 : i32
    %c0_i32_1 = arith.constant 0 : i32
    return %arg0, %c0_i32, %c0_i32_0 : i32, i32, i32
  }
  func.func @transform_1(%arg0: i32) -> (i32, i32) {
    %c0_i32 = arith.constant 0 : i32
    %c0_i32_0 = arith.constant 0 : i32
    %c0_i32_1 = arith.constant 0 : i32
    return %c0_i32, %c0_i32_0 : i32, i32
  }
  func.func @transform_2(%arg0: i32) -> (i32, i32) {
    %c0_i32 = arith.constant 0 : i32
    %c0_i32_0 = arith.constant 0 : i32
    %c0_i32_1 = arith.constant 0 : i32
    return %c0_i32, %c0_i32_0 : i32, i32
  }
  func.func @transform_3(%arg0: i32) -> (i32, i32) {
    %c0_i32 = arith.constant 0 : i32
    %c0_i32_0 = arith.constant 0 : i32
    %c0_i32_1 = arith.constant 0 : i32
    return %c0_i32, %c0_i32_0 : i32, i32
  }
  func.func @transform_4(%arg0: i32) -> (i32, i32) {
    %c0_i32 = arith.constant 0 : i32
    %c0_i32_0 = arith.constant 0 : i32
    %c0_i32_1 = arith.constant 0 : i32
    return %c0_i32, %c0_i32_0 : i32, i32
  }
  func.func @transform_5(%arg0: i32) -> (i32, i32, i32) {
    %c0_i32 = arith.constant 0 : i32
    %c0_i32_0 = arith.constant 0 : i32
    %c0_i32_1 = arith.constant 0 : i32
    return %arg0, %c0_i32, %c0_i32_0 : i32, i32, i32
  }
}

</mosaic_0001>

<llo_original>
// kernel: atten_forward.1
$region0: #{atten_forward.1}
  #allocation0 [shape = 'u32[]', space=smem, size = 0x4, offset = 0x4, fixed_abs, tag = 'smem constant byte address 0x4 - core index']
  #allocation1 [shape = 'u32[144,128]{1,0:T(1,128)}', space=vmem, size = 0x12000, scoped, tag = 'internal scratch']
  %s0 = inlined_call_operand.vmem [shape: f32[2,32,256], index: 0, kind: input, shape index: {}]
  %s1 = inlined_call_operand.vmem [shape: f32[32,8], index: 1, kind: input, shape index: {}]
  %s2 = inlined_call_operand.vmem [shape: f32[1,8], index: 2, kind: input, shape index: {}]
  %s3 = inlined_call_operand.vmem [shape: f32[32,8], index: 3, kind: input, shape index: {}]
  %s4 = inlined_call_operand.vmem [shape: f32[32,1], index: 4, kind: input, shape index: {}]
  %s5 = inlined_call_operand.vmem [shape: f32[2,32,256], index: 5, kind: output, shape index: {}]
  %s6 = sld [smem:[#allocation0]]
  $region53: #{atten_forward.1} parent=0
    _
  %s8 = ssub.s32 1, %s6
  %s9 = scalar_select 0, %s8, %s6
  loop: start=0, step=1, limit=4
  $region2: #{atten_forward.1} parent=0 // loop_pre_header
    _
  $region3: #{atten_forward.1} parent=0 // loop_header
    %s11 = sphi 0, %s15
    %p12 = scmp.ge.s32.totalorder %s11, 4
    %s21 = sphi 0, %s23
    %s24 = sphi 0, %s21
    %s25 = sphi 0, %s24
    %s41 = sphi 0, %s25
    %s45 = sphi 0, %s45
    %s47 = sphi 0, %s45
    %s48 = sphi 0, %s47
    %s62 = sphi 0, %s48
    %s66 = sphi 0, %s66
    %s68 = sphi 0, %s66
    %s69 = sphi 0, %s68
    %s83 = sphi 0, %s69
    %s87 = sphi 0, %s87
    %s89 = sphi 0, %s87
    %s90 = sphi 0, %s89
    %s104 = sphi 0, %s90
    %s108 = sphi 0, %s108
    %s110 = sphi 0, %s108
    %s111 = sphi 0, %s110
    %s125 = sphi 0, %s111
    %s131 = sphi 0, %s133
    %s134 = sphi 0, %s131
    %s135 = sphi 0, %s134
    %s151 = sphi 0, %s135
  $region4: #{atten_forward.1} parent=0 // loop_header_branch
    %14 = sbr.rel (%p12) target = $region8
  $region5: #{atten_forward.1} parent=0 // loop_body
    %s16 = ssub.s32 %s11, 1
    %s17 = ssub.s32 %s11, 2
    %s18 = sadd.s32 %s11, 1
    %s19 = ssub.s32 %s11, %s18
    %p20 = scmp.eq.s32.totalorder %s19, 0
    %s22 = sadd.s32 %s21, 1
    %s23 = scalar_select %p20, %s21, %s22
    %p26 = pneg %p20
    %p27 = scmp.eq.s32.totalorder %s11, 1
    %p28 = por %p26, %p27
    %p29 = scmp.ne.s32.totalorder %s21, %s24
    %p30 = scmp.eq.s32.totalorder %s11, 0
    %p31 = por %p29, %p30
    %p32 = scmp.ne.s32.totalorder %s21, %s24
    %p33 = scmp.eq.s32.totalorder %s16, 1
    %p34 = por %p32, %p33
    %p35 = scmp.ne.s32.totalorder %s24, %s25
    %p36 = scmp.eq.s32.totalorder %s16, 0
    %p37 = por %p35, %p36
    %p38 = scmp.ne.s32.totalorder %s24, %s25
    %p39 = scmp.eq.s32.totalorder %s17, 1
    %p40 = por %p38, %p39
    %p42 = scmp.ne.s32.totalorder %s25, %s41
    %p43 = scmp.eq.s32.totalorder %s17, 0
    %p44 = por %p42, %p43
    %s46 = sadd.s32 %s45, 1
    %p49 = scmp.eq.s32.totalorder %s11, 1
    %p50 = scmp.ne.s32.totalorder %s45, %s47
    %p51 = scmp.eq.s32.totalorder %s11, 0
    %p52 = por %p50, %p51
    %p53 = scmp.ne.s32.totalorder %s45, %s47
    %p54 = scmp.eq.s32.totalorder %s16, 1
    %p55 = por %p53, %p54
    %p56 = scmp.ne.s32.totalorder %s47, %s48
    %p57 = scmp.eq.s32.totalorder %s16, 0
    %p58 = por %p56, %p57
    %p59 = scmp.ne.s32.totalorder %s47, %s48
    %p60 = scmp.eq.s32.totalorder %s17, 1
    %p61 = por %p59, %p60
    %p63 = scmp.ne.s32.totalorder %s48, %s62
    %p64 = scmp.eq.s32.totalorder %s17, 0
    %p65 = por %p63, %p64
    %s67 = sadd.s32 %s66, 1
    %p70 = scmp.eq.s32.totalorder %s11, 1
    %p71 = scmp.ne.s32.totalorder %s66, %s68
    %p72 = scmp.eq.s32.totalorder %s11, 0
    %p73 = por %p71, %p72
    %p74 = scmp.ne.s32.totalorder %s66, %s68
    %p75 = scmp.eq.s32.totalorder %s16, 1
    %p76 = por %p74, %p75
    %p77 = scmp.ne.s32.totalorder %s68, %s69
    %p78 = scmp.eq.s32.totalorder %s16, 0
    %p79 = por %p77, %p78
    %p80 = scmp.ne.s32.totalorder %s68, %s69
    %p81 = scmp.eq.s32.totalorder %s17, 1
    %p82 = por %p80, %p81
    %p84 = scmp.ne.s32.totalorder %s69, %s83
    %p85 = scmp.eq.s32.totalorder %s17, 0
    %p86 = por %p84, %p85
    %s88 = sadd.s32 %s87, 1
    %p91 = scmp.eq.s32.totalorder %s11, 1
    %p92 = scmp.ne.s32.totalorder %s87, %s89
    %p93 = scmp.eq.s32.totalorder %s11, 0
    %p94 = por %p92, %p93
    %p95 = scmp.ne.s32.totalorder %s87, %s89
    %p96 = scmp.eq.s32.totalorder %s16, 1
    %p97 = por %p95, %p96
    %p98 = scmp.ne.s32.totalorder %s89, %s90
    %p99 = scmp.eq.s32.totalorder %s16, 0
    %p100 = por %p98, %p99
    %p101 = scmp.ne.s32.totalorder %s89, %s90
    %p102 = scmp.eq.s32.totalorder %s17, 1
    %p103 = por %p101, %p102
    %p105 = scmp.ne.s32.totalorder %s90, %s104
    %p106 = scmp.eq.s32.totalorder %s17, 0
    %p107 = por %p105, %p106
    %s109 = sadd.s32 %s108, 1
    %p112 = scmp.eq.s32.totalorder %s11, 1
    %p113 = scmp.ne.s32.totalorder %s108, %s110
    %p114 = scmp.eq.s32.totalorder %s11, 0
    %p115 = por %p113, %p114
    %p116 = scmp.ne.s32.totalorder %s108, %s110
    %p117 = scmp.eq.s32.totalorder %s16, 1
    %p118 = por %p116, %p117
    %p119 = scmp.ne.s32.totalorder %s110, %s111
    %p120 = scmp.eq.s32.totalorder %s16, 0
    %p121 = por %p119, %p120
    %p122 = scmp.ne.s32.totalorder %s110, %s111
    %p123 = scmp.eq.s32.totalorder %s17, 1
    %p124 = por %p122, %p123
    %p126 = scmp.ne.s32.totalorder %s111, %s125
    %p127 = scmp.eq.s32.totalorder %s17, 0
    %p128 = por %p126, %p127
    %s129 = ssub.s32 %s11, %s18
    %p130 = scmp.eq.s32.totalorder %s129, 0
    %s132 = sadd.s32 %s131, 1
    %s133 = scalar_select %p130, %s131, %s132
    %p136 = pneg %p130
    %p137 = scmp.eq.s32.totalorder %s11, 1
    %p138 = por %p136, %p137
    %p139 = scmp.ne.s32.totalorder %s131, %s134
    %p140 = scmp.eq.s32.totalorder %s11, 0
    %p141 = por %p139, %p140
    %p142 = scmp.ne.s32.totalorder %s131, %s134
    %p143 = scmp.eq.s32.totalorder %s16, 1
    %p144 = por %p142, %p143
    %p145 = scmp.ne.s32.totalorder %s134, %s135
    %p146 = scmp.eq.s32.totalorder %s16, 0
    %p147 = por %p145, %p146
    %p148 = scmp.ne.s32.totalorder %s134, %s135
    %p149 = scmp.eq.s32.totalorder %s17, 1
    %p150 = por %p148, %p149
    %p152 = scmp.ne.s32.totalorder %s135, %s151
    %p153 = scmp.eq.s32.totalorder %s17, 0
    %p154 = por %p152, %p153
    %p155 = scmp.le.s32.totalorder 1, %s11
    %p156 = scmp.lt.s32.totalorder %s11, 3
    %p157 = pnand %p155, %p156
    %p158 = pneg %p157
    // Predicated region
    $region9: #{atten_forward.1} parent=5 // pred_check
      _
    $region10: #{atten_forward.1} parent=5 // pred_check_branch
      %160 = sbr.rel (%p157) target = $region12
    $region11: #{atten_forward.1} parent=5 // pred_region
      %s161 = ssub.s32 %s11, 1
      // Predicated region
      $region13: #{atten_forward.1} parent=11 // pred_check
        %p162 = pneg %p58
      $region14: #{atten_forward.1} parent=11 // pred_check_branch
        %164 = sbr.rel (%p162) target = $region16
      $region15: #{atten_forward.1} parent=11 // pred_region
        _
      $region16: #{atten_forward.1} parent=11 // pred_fallthru
        _
      // Predicated region
      $region17: #{atten_forward.1} parent=11 // pred_check
        %p165 = pneg %p79
      $region18: #{atten_forward.1} parent=11 // pred_check_branch
        %167 = sbr.rel (%p165) target = $region20
      $region19: #{atten_forward.1} parent=11 // pred_region
        _
      $region20: #{atten_forward.1} parent=11 // pred_fallthru
        _
      // Predicated region
      $region21: #{atten_forward.1} parent=11 // pred_check
        %p168 = pneg %p100
      $region22: #{atten_forward.1} parent=11 // pred_check_branch
        %170 = sbr.rel (%p168) target = $region24
      $region23: #{atten_forward.1} parent=11 // pred_region
        _
      $region24: #{atten_forward.1} parent=11 // pred_fallthru
        _
      // Predicated region
      $region25: #{atten_forward.1} parent=11 // pred_check
        %p171 = pneg %p121
      $region26: #{atten_forward.1} parent=11 // pred_check_branch
        %173 = sbr.rel (%p171) target = $region28
      $region27: #{atten_forward.1} parent=11 // pred_region
        _
      $region28: #{atten_forward.1} parent=11 // pred_fallthru
        _
    $region12: #{atten_forward.1} parent=5 // pred_fallthru
      _
    %p174 = scmp.lt.s32.totalorder %s11, 2
    // Predicated region
    $region29: #{atten_forward.1} parent=5 // pred_check
      %p175 = pneg %p174
    $region30: #{atten_forward.1} parent=5 // pred_check_branch
      %177 = sbr.rel (%p175) target = $region32
    $region31: #{atten_forward.1} parent=5 // pred_region
      // Predicated region
      $region33: #{atten_forward.1} parent=31 // pred_check
        %p178 = pneg %p31
      $region34: #{atten_forward.1} parent=31 // pred_check_branch
        %180 = sbr.rel (%p178) target = $region36
      $region35: #{atten_forward.1} parent=31 // pred_region
        %p181 = scmp.lt.s32.totalorder %s11, 1
        %s182 = scalar_select %p181, %s11, 1
        %s183 = smul.addr %s182, 8
        %s184 = smul.addr %s183, 8
        %s185 = scalar_lea.vmem %s0, %s184
      $region36: #{atten_forward.1} parent=31 // pred_fallthru
        _
    $region32: #{atten_forward.1} parent=5 // pred_fallthru
      _
    %p186 = scmp.le.s32.totalorder 1, %s11
    %p187 = scmp.lt.s32.totalorder %s11, 3
    %p188 = pnand %p186, %p187
    %p189 = pneg %p188
    // Predicated region
    $region37: #{atten_forward.1} parent=5 // pred_check
      _
    $region38: #{atten_forward.1} parent=5 // pred_check_branch
      %191 = sbr.rel (%p188) target = $region40
    $region39: #{atten_forward.1} parent=5 // pred_region
      %s192 = ssub.s32 %s11, 1
      %p193 = scmp.lt.s32.totalorder %s16, 1
      %s194 = scalar_select %p193, %s16, 1
      %s195 = smul.addr %s194, 8
      %s196 = smul.addr %s195, 8
      %s197 = scalar_lea.vmem %s0, %s196
      %p198 = pneg %p37
      %p199 = pneg %p34
      %p200 = pneg %p58
      %p201 = pneg %p55
      %p202 = pneg %p79
      %p203 = pneg %p76
      %p204 = pneg %p100
      %p205 = pneg %p97
      %p206 = pneg %p121
      %p207 = pneg %p118
      %p208 = pneg %p147
      %p209 = pneg %p144
      %p210 = scmp.lt.s32.totalorder %s16, 1
      %s211 = scalar_select %p210, %s16, 1
      %s212 = smul.addr %s211, 8
      %s213 = smul.addr %s212, 8
      %s214 = scalar_lea.vmem %s5, %s213
      %p215 = scmp.lt.s32.totalorder %s16, 1
      %s216 = scalar_select %p215, %s16, 1
      %s217 = smul.addr %s216, 8
      %s218 = smul.addr %s217, 8
      %s219 = scalar_lea.vmem %s0, %s218
      %p220 = scmp.lt.s32.totalorder %s16, 1
      %s221 = scalar_select %p220, %s16, 1
      %s222 = smul.addr %s221, 8
      %s223 = smul.addr %s222, 8
      %s224 = scalar_lea.vmem %s5, %s223
      %v225 = vld [vmem:[%s219] sm:$0xff]
      %v226 = vld [vmem:[%s219 + $0x8] sm:$0xff]
      %v227 = vld [vmem:[%s219 + $0x10] sm:$0xff]
      %v228 = vld [vmem:[%s219 + $0x18] sm:$0xff]
      %v229 = vld [vmem:[%s219 + $0x20] sm:$0xff]
      %v230 = vld [vmem:[%s219 + $0x28] sm:$0xff]
      %v231 = vld [vmem:[%s219 + $0x30] sm:$0xff]
      %v232 = vld [vmem:[%s219 + $0x38] sm:$0xff]
      %v233 = vadd.f32 %v225, %v226
      %234 = vadd.xlane.f32.xlu0 %v233
      %v235 = vpop.xlane.xlu0 %234
      %v236 = vadd.f32 %v227, %v228
      %237 = vadd.xlane.f32.xlu0 %v236
      %v238 = vpop.xlane.xlu0 %237
      %v239 = vadd.f32 %v229, %v230
      %240 = vadd.xlane.f32.xlu0 %v239
      %v241 = vpop.xlane.xlu0 %240
      %v242 = vadd.f32 %v231, %v232
      %243 = vadd.xlane.f32.xlu0 %v242
      %v244 = vpop.xlane.xlu0 %243
      %v245 = vmul.f32 %v235, 0.00390625
      %v246 = vmul.f32 %v238, 0.00390625
      %v247 = vmul.f32 %v241, 0.00390625
      %v248 = vmul.f32 %v244, 0.00390625
      %v249 = vld [vmem:[%s1] sm:$0xff]
      %v250 = vld [vmem:[%s1 + $0x8] sm:$0xff]
      %v251 = vld [vmem:[%s1 + $0x10] sm:$0xff]
      %v252 = vld [vmem:[%s1 + $0x18] sm:$0xff]
      %v253 = vmul.f32 %v245, %v249
      %v254 = vmul.f32 %v246, %v250
      %v255 = vmul.f32 %v247, %v251
      %v256 = vmul.f32 %v248, %v252
      %vm257 = vcmask 64512
      %v258 = vsel %vm257, %v253, 0.0
      %v259 = vsel %vm257, %v254, 0.0
      %v260 = vadd.f32 %v258, %v259
      %v261 = vsel %vm257, %v255, 0.0
      %v262 = vadd.f32 %v260, %v261
      %v263 = vsel %vm257, %v256, 0.0
      %v264 = vadd.f32 %v262, %v263
      %v265 = vrot.slane %v264, 4
      %v266 = vadd.f32 %v264, %v265
      %v267 = vrot.slane %v266, 2
      %v268 = vadd.f32 %v266, %v267
      %v269 = vrot.slane %v268, 1
      %v270 = vadd.f32 %v268, %v269
      %v271 = vld [vmem:[%s2] sm:$0x1]
      %v272 = vadd.f32 %v270, %v271
      %v273 = vmul.f32 %v272, 0.5
      %v274 = vmul.f32 %v272, 0.70710677
      %v275 = vand.u32 2147483647, %v274
      %v276 = vmul.f32 %v275, 0.3275911
      %v277 = vadd.f32 %v276, 1.0
      %v278 = vrcp.pop %v277
      %v279 = vmul.f32 1.0, %v278
      %v280 = vmul.f32 %v279, 1.0614054
      %v281 = vadd.f32 %v280, -1.4531521
      %v282 = vmul.f32 %v281, %v279
      %v283 = vadd.f32 %v282, 1.4214138
      %v284 = vmul.f32 %v283, %v279
      %v285 = vadd.f32 %v284, -0.28449672
      %v286 = vmul.f32 %v285, %v279
      %v287 = vadd.f32 %v286, 0.2548296
      %v288 = vmul.f32 %v287, %v279
      %v289 = vmul.f32 %v275, %v275
      %v290 = vsub.f32 0.0, %v289
      %v291 = vmul.f32 %v290, 1.442695
      %v292 = vpow.pop %v291
      %v293 = vmul.f32 %v288, %v292
      %v294 = vsub.f32 1.0, %v293
      %vm295 = vcmp.ge.f32.partialorder %v274, 0.0
      %v296 = vsub.f32 0.0, %v294
      %v297 = vsel %vm295, %v294, %v296
      %v298 = vadd.f32 %v297, 1.0
      %v299 = vmul.f32 %v273, %v298
      %v300 = vld [vmem:[%s3] sm:$0xff]
      %v301 = vld [vmem:[%s3 + $0x8] sm:$0xff]
      %v302 = vld [vmem:[%s3 + $0x10] sm:$0xff]
      %v303 = vld [vmem:[%s3 + $0x18] sm:$0xff]
      %v304 = vlaneseq
      %v305 = vshrl.u32 %v304, 7
      %v306 = vsub.s32 0, %v305
      %v307 = vrot.slane %v299, %v306
      %v308 = vmul.f32 %v300, %v307
      %v309 = vmul.f32 %v301, %v307
      %v310 = vmul.f32 %v302, %v307
      %v311 = vmul.f32 %v303, %v307
      %v312 = vsel %vm257, %v308, 0.0
      %313 = vadd.xlane.f32.xlu0 %v312
      %v314 = vpop.xlane.xlu0 %313
      %v315 = vsel %vm257, %v309, 0.0
      %316 = vadd.xlane.f32.xlu0 %v315
      %v317 = vpop.xlane.xlu0 %316
      %v318 = vsel %vm257, %v310, 0.0
      %319 = vadd.xlane.f32.xlu0 %v318
      %v320 = vpop.xlane.xlu0 %319
      %v321 = vsel %vm257, %v311, 0.0
      %322 = vadd.xlane.f32.xlu0 %v321
      %v323 = vpop.xlane.xlu0 %322
      %v324 = vld [vmem:[%s4] sm:$0xff]
      %v325 = vld [vmem:[%s4 + $0x8] sm:$0xff]
      %v326 = vld [vmem:[%s4 + $0x10] sm:$0xff]
      %v327 = vld [vmem:[%s4 + $0x18] sm:$0xff]
      %v328 = vadd.f32 %v314, %v324
      %v329 = vadd.f32 %v317, %v325
      %v330 = vadd.f32 %v320, %v326
      %v331 = vadd.f32 %v323, %v327
      %v332 = vsub.f32 0.0, %v328
      %v333 = vsub.f32 0.0, %v329
      %v334 = vsub.f32 0.0, %v330
      %v335 = vsub.f32 0.0, %v331
      %v336 = vmul.f32 %v332, 1.442695
      %v337 = vpow.pop %v336
      %v338 = vmul.f32 %v333, 1.442695
      %v339 = vpow.pop %v338
      %v340 = vmul.f32 %v334, 1.442695
      %v341 = vpow.pop %v340
      %v342 = vmul.f32 %v335, 1.442695
      %v343 = vpow.pop %v342
      %v344 = vadd.f32 %v337, 1.0
      %v345 = vadd.f32 %v339, 1.0
      %v346 = vadd.f32 %v341, 1.0
      %v347 = vadd.f32 %v343, 1.0
      %v348 = vrcp.pop %v344
      %v349 = vmul.f32 1.0, %v348
      %v350 = vrcp.pop %v345
      %v351 = vmul.f32 1.0, %v350
      %v352 = vrcp.pop %v346
      %v353 = vmul.f32 1.0, %v352
      %v354 = vrcp.pop %v347
      %v355 = vmul.f32 1.0, %v354
      %357 = vset.pattern.permute.xlu0 0
      %358 = vperm.xlu0 %357, %v349
      %v359 = vpop.permute.xlu0 %358
      %362 = vset.pattern.permute.xlu0 0
      %363 = vperm.xlu0 %362, %v351
      %v364 = vpop.permute.xlu0 %363
      %367 = vset.pattern.permute.xlu0 0
      %368 = vperm.xlu0 %367, %v353
      %v369 = vpop.permute.xlu0 %368
      %372 = vset.pattern.permute.xlu0 0
      %373 = vperm.xlu0 %372, %v355
      %v374 = vpop.permute.xlu0 %373
      %v376 = vmul.f32 %v225, %v359
      %v377 = vmul.f32 %v226, %v359
      %v378 = vmul.f32 %v227, %v364
      %v379 = vmul.f32 %v228, %v364
      %v380 = vmul.f32 %v229, %v369
      %v381 = vmul.f32 %v230, %v369
      %v382 = vmul.f32 %v231, %v374
      %v383 = vmul.f32 %v232, %v374
      %v384 = vmax.f32 %v376, %v380
      %v385 = vmax.f32 %v378, %v382
      %v386 = vmax.f32 %v384, %v385
      %v387 = vrot.slane %v386, 4
      %v388 = vmax.f32 %v386, %v387
      %v389 = vrot.slane %v388, 2
      %v390 = vmax.f32 %v388, %v389
      %v391 = vrot.slane %v390, 1
      %v392 = vmax.f32 %v390, %v391
      %v393 = vmax.f32 %v377, %v381
      %v394 = vmax.f32 %v379, %v383
      %v395 = vmax.f32 %v393, %v394
      %v396 = vrot.slane %v395, 4
      %v397 = vmax.f32 %v395, %v396
      %v398 = vrot.slane %v397, 2
      %v399 = vmax.f32 %v397, %v398
      %v400 = vrot.slane %v399, 1
      %v401 = vmax.f32 %v399, %v400
      %v402 = vsub.f32 0.0, %v392
      %v403 = vsub.f32 0.0, %v401
      %v404 = vmul.f32 %v402, 1.442695
      %v405 = vpow.pop %v404
      %v406 = vmul.f32 %v403, 1.442695
      %v407 = vpow.pop %v406
      %v408 = vadd.f32 %v405, 1.0
      %v409 = vadd.f32 %v407, 1.0
      %v410 = vrcp.pop %v408
      %v411 = vrcp.pop %v409
      %v412 = vmul.f32 %v376, %v410
      %v413 = vmul.f32 %v377, %v411
      %v414 = vmul.f32 %v378, %v410
      %v415 = vmul.f32 %v379, %v411
      %v416 = vmul.f32 %v380, %v410
      %v417 = vmul.f32 %v381, %v411
      %v418 = vmul.f32 %v382, %v410
      %v419 = vmul.f32 %v383, %v411
      %v420 = vadd.f32 %v225, %v412
      %v421 = vadd.f32 %v226, %v413
      %v422 = vadd.f32 %v227, %v414
      %v423 = vadd.f32 %v228, %v415
      %v424 = vadd.f32 %v229, %v416
      %v425 = vadd.f32 %v230, %v417
      %v426 = vadd.f32 %v231, %v418
      %v427 = vadd.f32 %v232, %v419
      %428 = vst [vmem:[%s224] sm:$0xff] %v420
      %429 = vst [vmem:[%s224 + $0x8] sm:$0xff] %v421
      %430 = vst [vmem:[%s224 + $0x10] sm:$0xff] %v422
      %431 = vst [vmem:[%s224 + $0x18] sm:$0xff] %v423
      %432 = vst [vmem:[%s224 + $0x20] sm:$0xff] %v424
      %433 = vst [vmem:[%s224 + $0x28] sm:$0xff] %v425
      %434 = vst [vmem:[%s224 + $0x30] sm:$0xff] %v426
      %435 = vst [vmem:[%s224 + $0x38] sm:$0xff] %v427
      %p436 = scmp.lt.s32.totalorder %s16, 1
      %s437 = scalar_select %p436, %s16, 1
      %s438 = smul.addr %s437, 8
      %s439 = smul.addr %s438, 8
      %s440 = scalar_lea.vmem %s5, %s439
      // Predicated region
      $region41: #{atten_forward.1} parent=39 // pred_check
        %p441 = pneg %p144
      $region42: #{atten_forward.1} parent=39 // pred_check_branch
        %443 = sbr.rel (%p441) target = $region44
      $region43: #{atten_forward.1} parent=39 // pred_region
        _
      $region44: #{atten_forward.1} parent=39 // pred_fallthru
        _
    $region40: #{atten_forward.1} parent=5 // pred_fallthru
      _
    %p444 = scmp.le.s32.totalorder 2, %s11
    // Predicated region
    $region45: #{atten_forward.1} parent=5 // pred_check
      %p445 = pneg %p444
    $region46: #{atten_forward.1} parent=5 // pred_check_branch
      %447 = sbr.rel (%p445) target = $region48
    $region47: #{atten_forward.1} parent=5 // pred_region
      %s448 = ssub.s32 %s11, 2
      // Predicated region
      $region49: #{atten_forward.1} parent=47 // pred_check
        %p449 = pneg %p150
      $region50: #{atten_forward.1} parent=47 // pred_check_branch
        %451 = sbr.rel (%p449) target = $region52
      $region51: #{atten_forward.1} parent=47 // pred_region
        %p452 = scmp.lt.s32.totalorder %s17, 1
        %s453 = scalar_select %p452, %s17, 1
        %s454 = smul.addr %s453, 8
        %s455 = smul.addr %s454, 8
        %s456 = scalar_lea.vmem %s5, %s455
      $region52: #{atten_forward.1} parent=47 // pred_fallthru
        _
    $region48: #{atten_forward.1} parent=5 // pred_fallthru
      _
  $region6: #{atten_forward.1} parent=0 // loop_footer
    %s15 = sadd.s32 1, %s11
  $region7: #{atten_forward.1} parent=0 // loop_footer_branch
    %10 = sbr.rel target = $region3
  $region8: #{atten_forward.1} parent=0 // loop_exit
    _

</llo_original>
